<compile_context>
chip_gen: v7x
topology: tpu7x:2x2x1
jax: 0.10.0
libtpu: 0.0.40
codegen_flags: <defaults>
</compile_context>

<pallas_src>
import math

import jax
import jax.numpy as jnp
from jax.experimental import pallas as pl
from jax.experimental.pallas import tpu as pltpu

_LANES = 128                    # TPU vreg lane width
_ROW_BLOCK = 4096               # 4096 x 128 f32 = 2 MiB/block; double-buffered in+out = 8 MiB
_SINGLE_BLOCK_ROWS = 2048       # <= 1 MiB f32 -> one block; above this force grid >= 2 (v7x megacore)
_MIN_KERNEL_ELEMS = 64 * 1024   # below this, letting XLA fuse the elementwise op beats a launch
_INV_PI = float(1.0 / math.pi)


def _quantum_sign_kernel(x_ref, o_ref):
    # Most-probable RX(x) measurement outcome: qubit reads 1 iff cos(x) < 0,
    # tested via the parity of floor(x/pi + 0.5) (mul, add, floor, i32 cvt, and, cmp).
    x = x_ref[...].astype(jnp.float32)          # in-vreg upcast for bf16/f16 inputs
    k = jnp.floor(x * _INV_PI + 0.5).astype(jnp.int32)
    odd = (k & 1) == 1
    one = jnp.ones((), dtype=o_ref.dtype)
    o_ref[...] = jnp.where(odd, one, -one)


def quantum_layer_ref(x, out_dtype=jnp.float32):
    """Pure-JAX reference; identical math to the kernel (parity form of cos(x) < 0)."""
    xf = x.astype(jnp.float32)
    k = jnp.floor(xf * _INV_PI + 0.5).astype(jnp.int32)
    return jnp.where((k & 1) == 1, 1, -1).astype(out_dtype)


def quantum_layer(x, out_dtype=jnp.float32, *, min_kernel_elems=_MIN_KERNEL_ELEMS):
    """x: (batch, num_patches, num_qubits) -> same shape, values in {+1, -1}.

    out_dtype may be jnp.bfloat16 / jnp.int8 to shrink HBM writeback (+-1 is exact
    in both); default float32 matches the PyTorch reference.  Inputs smaller than
    `min_kernel_elems` are evaluated with the fused pure-JAX path.
    """
    orig_shape = x.shape
    n = x.size
    if n == 0:
        return jnp.zeros(orig_shape, out_dtype)
    if n < min_kernel_elems:
        # Tiny inputs: pallas_call launch overhead dominates; let XLA fuse it.
        return quantum_layer_ref(x, out_dtype)

    if n % _LANES == 0:
        # Free lane-dense reshape: no pad pass, no output slice pass.
        x2d = x.reshape(-1, _LANES)
        pad = 0
    else:
        # Rare ragged case: pad only the tail (<=127 elements) up to a lane multiple.
        pad = _LANES - (n % _LANES)
        x2d = jnp.pad(x.reshape(-1), (0, pad)).reshape(-1, _LANES)

    rows = x2d.shape[0]
    if rows <= _SINGLE_BLOCK_ROWS:
        # Single block == full array dims (no (8,128) divisibility requirement).
        block_rows = rows
    else:
        # At least 2 blocks (feeds both v7x TensorCores), each <= _ROW_BLOCK rows,
        # rounded up to a sublane multiple of 8; Pallas masks the partial last block.
        half = -(-rows // 2)
        block_rows = min(_ROW_BLOCK, -(-half // 8) * 8)
    grid = (pl.cdiv(rows, block_rows),)

    out2d = pl.pallas_call(
        _quantum_sign_kernel,
        out_shape=jax.ShapeDtypeStruct((rows, _LANES), out_dtype),
        grid=grid,
        in_specs=[pl.BlockSpec((block_rows, _LANES), lambda i: (i, 0))],
        out_specs=pl.BlockSpec((block_rows, _LANES), lambda i: (i, 0)),
        compiler_params=pltpu.CompilerParams(
            dimension_semantics=("parallel",),
        ),
    )(x2d)

    if pad:
        return out2d.reshape(-1)[:n].reshape(orig_shape)
    return out2d.reshape(orig_shape)


if __name__ == "__main__":
    # QuantumLayer(num_qubits=8, num_layers=2); num_layers is unused in forward.
    batch, num_patches, num_qubits = 2, 16, 8

    key = jax.random.PRNGKey(0)
    # Rotation angles in [0, 2*pi) so both branches (+1 / -1) are exercised.
    x = jax.random.uniform(
        key, (batch, num_patches, num_qubits), dtype=jnp.float32,
        minval=0.0, maxval=2.0 * jnp.pi,
    )

    # Default dispatch (tiny input -> fused XLA path).
    out_small = jax.block_until_ready(quantum_layer(x))
    ref_small = quantum_layer_ref(x)
    assert out_small.shape == (batch, num_patches, num_qubits)
    assert out_small.dtype == jnp.float32
    assert bool(jnp.all(out_small == ref_small))

    # Force the Pallas kernel on the same small shape (single lane-dense block, grid=(1,)).
    out_small_k = jax.block_until_ready(quantum_layer(x, min_kernel_elems=0))
    assert bool(jnp.all(out_small_k == ref_small))

    # Cross-check the parity test against the cos-based decision away from boundaries.
    cos_ref = jnp.where(jnp.cos(x) < 0.0, 1.0, -1.0)
    near_boundary = jnp.abs(jnp.cos(x)) < 1e-5
    assert bool(jnp.all((out_small_k == cos_ref) | near_boundary))

    # Tiled path: 8192 lane-rows -> two 4096-row (2 MiB) parallel blocks.
    key2 = jax.random.PRNGKey(1)
    x_big = jax.random.uniform(
        key2, (8, 4096, 32), dtype=jnp.float32, minval=-jnp.pi, maxval=3.0 * jnp.pi,
    )
    out_big = jax.block_until_ready(quantum_layer(x_big))
    assert bool(jnp.all(out_big == quantum_layer_ref(x_big)))

    # bf16 input (no wrapper upcast pass) and int8 output (narrow writeback), both exact for +-1.
    x_bf16 = x_big.astype(jnp.bfloat16)
    out_bf16_in = jax.block_until_ready(quantum_layer(x_bf16))
    assert bool(jnp.all(out_bf16_in == quantum_layer_ref(x_bf16)))
    out_i8 = jax.block_until_ready(quantum_layer(x_big, out_dtype=jnp.int8))
    assert bool(jnp.all(out_i8.astype(jnp.float32) == out_big))

    # Partial last block (rows=2100, block_rows=1056, grid=(2,)) exercises masked block writes.
    key3 = jax.random.PRNGKey(2)
    x_partial = jax.random.uniform(
        key3, (3, 700, 128), dtype=jnp.float32, minval=0.0, maxval=2.0 * jnp.pi,
    )
    out_partial = jax.block_until_ready(quantum_layer(x_partial))
    assert bool(jnp.all(out_partial == quantum_layer_ref(x_partial)))

    print("KERNEL_OK")
</pallas_src>

<mosaic_0001>
module attributes {stable_mosaic.version = 11 : i64} {
  func.func @_quantum_sign_kernel(%arg0: i32, %arg1: memref<2x128xf32, #tpu.memory_space<vmem>>, %arg2: memref<2x128xf32, #tpu.memory_space<vmem>>) attributes {dimension_semantics = [#tpu.dimension_semantics<parallel>], iteration_bounds = array<i64: 1>, scalar_prefetch = 0 : i64, scratch_operands = 0 : i64, tpu.core_type = #tpu.core_type<tc>, window_params = [{transform_indices = @transform_0, window_bounds = array<i64: 2, 128>}, {transform_indices = @transform_1, window_bounds = array<i64: 2, 128>}]} {
    %c0 = arith.constant 0 : index
    %c0_0 = arith.constant 0 : index
    %0 = vector.load %arg1[%c0, %c0_0] : memref<2x128xf32, #tpu.memory_space<vmem>>, vector<2x128xf32>
    %cst = arith.constant 0.318309873 : f32
    %1 = vector.broadcast %cst : f32 to vector<2x128xf32>
    %2 = arith.mulf %0, %1 : vector<2x128xf32>
    %cst_1 = arith.constant 5.000000e-01 : f32
    %3 = vector.broadcast %cst_1 : f32 to vector<2x128xf32>
    %4 = arith.addf %2, %3 : vector<2x128xf32>
    %5 = math.floor %4 : vector<2x128xf32>
    %6 = arith.fptosi %5 : vector<2x128xf32> to vector<2x128xi32>
    %c1_i32 = arith.constant 1 : i32
    %7 = vector.broadcast %c1_i32 : i32 to vector<2x128xi32>
    %8 = arith.andi %6, %7 : vector<2x128xi32>
    %c1_i32_2 = arith.constant 1 : i32
    %9 = vector.broadcast %c1_i32_2 : i32 to vector<2x128xi32>
    %10 = arith.cmpi eq, %8, %9 : vector<2x128xi32>
    %cst_3 = arith.constant 0.000000e+00 : f32
    %cst_4 = arith.constant 1.000000e+00 : f32
    %11 = arith.subf %cst_3, %cst_4 : f32
    %cst_5 = arith.constant 1.000000e+00 : f32
    %12 = vector.broadcast %cst_5 : f32 to vector<2x128xf32>
    %13 = vector.broadcast %11 : f32 to vector<2x128xf32>
    %14 = arith.select %10, %12, %13 : vector<2x128xi1>, vector<2x128xf32>
    %c0_6 = arith.constant 0 : index
    %c0_7 = arith.constant 0 : index
    %15 = vector.load %arg2[%c0_6, %c0_7] : memref<2x128xf32, #tpu.memory_space<vmem>>, vector<2x128xf32>
    tpu.vector_store %arg2[%c0_6, %c0_7], %14 {strides = array<i32>} : memref<2x128xf32, #tpu.memory_space<vmem>>, vector<2x128xf32>,
    return
  }
  func.func @transform_0(%arg0: i32) -> (i32, i32) {
    %c0_i32 = arith.constant 0 : i32
    %c0_i32_0 = arith.constant 0 : i32
    return %arg0, %c0_i32 : i32, i32
  }
  func.func @transform_1(%arg0: i32) -> (i32, i32) {
    %c0_i32 = arith.constant 0 : i32
    %c0_i32_0 = arith.constant 0 : i32
    return %arg0, %c0_i32 : i32, i32
  }
}

</mosaic_0001>

<llo_original>
// kernel: tpu_custom_call.1
$region0: #{tpu_custom_call.1}
  #allocation0 [shape = 'u32[]', space=smem, size = 0x4, offset = 0x4, fixed_abs, tag = 'smem constant byte address 0x4 - core index']
  #allocation1 [shape = 'u32[144,128]{1,0:T(1,128)}', space=vmem, size = 0x12000, scoped, tag = 'internal scratch']
  %s0 = inlined_call_operand.hbm [shape: f32[2,128], index: 0, kind: input, shape index: {}]
  %s1 = inlined_call_operand.hbm [shape: f32[2,128], index: 1, kind: output, shape index: {}]
  %s2 = sld [smem:[#allocation0]]
  $region18: #{tpu_custom_call.1} parent=0
    _
  %s4 = ssub.s32 1, %s2
  %s5 = scalar_select 0, %s4, %s2
  $region1: #{tpu_custom_call.1} parent=0
    #allocation2 [shape = 'u8[1024]{0}', space=vmem, size = 0x400, scoped, tag = 'input window, operand 0, single buffered']
    #allocation3 [shape = 's32[1]{0}', space=sflag, size = 0x4, scoped, tag = 'scoped memory for tpu_custom_call.1']
    #allocation4 [shape = 's32[1]{0}', space=sflag, size = 0x4, scoped, tag = 'scoped memory for tpu_custom_call.1']
    #allocation5 [shape = 'u8[1024]{0}', space=vmem, size = 0x400, scoped, tag = 'output window, operand 0, single buffered']
    %6 = vsyncpa [#allocation3], 0
    %7 = vsyncpa [#allocation4], 0
    // Predicated region
    $region2: #{tpu_custom_call.1} parent=1 // pred_check
      _
    $region3: #{tpu_custom_call.1} parent=1 // pred_check_branch
      %9 = sbr.rel (0) target = $region5
    $region4: #{tpu_custom_call.1} parent=1 // pred_region
      %s11 = ssub.s32 32, 32
      %12 = vsyncadd [#allocation3], %s11
      %s14 = sshll.u32 [#allocation2], 4
      %s15 = int_to_ptr.vmem [resolvable:$true] %s14
      %17 = dma.hbm_to_vmem [thread:$0]  %s0, 32, %s15, [#allocation3]
    $region5: #{tpu_custom_call.1} parent=1 // pred_fallthru
      _
    // Predicated region
    $region6: #{tpu_custom_call.1} parent=1 // pred_check
      _
    $region7: #{tpu_custom_call.1} parent=1 // pred_check_branch
      %19 = sbr.rel (0) target = $region9
    $region8: #{tpu_custom_call.1} parent=1 // pred_region
      %20 = dma.done [#allocation3], 32
    $region9: #{tpu_custom_call.1} parent=1 // pred_fallthru
      _
    %v21 = vld [vmem:[#allocation2] sm:$0x3]
    %v22 = vmul.f32 %v21, 0.31830987
    %v23 = vadd.f32 %v22, 0.5
    %v24 = vfloor.f32 %v23
    %v25 = vcvt.f32.s32.to.zero.pseudo %v24
    %v26 = vand.u32 %v25, 1
    %vm27 = vcmp.eq.s32.totalorder %v26, 1
    %v28 = vsel %vm27, 1.0, -1.0
    %29 = vst [vmem:[#allocation5] sm:$0x3] %v28
    // Predicated region
    $region10: #{tpu_custom_call.1} parent=1 // pred_check
      _
    $region11: #{tpu_custom_call.1} parent=1 // pred_check_branch
      %31 = sbr.rel (0) target = $region13
    $region12: #{tpu_custom_call.1} parent=1 // pred_region
      %s33 = ssub.s32 32, 32
      %34 = vsyncadd [#allocation4], %s33
      %s36 = sshll.u32 [#allocation5], 4
      %s37 = int_to_ptr.vmem [resolvable:$true] %s36
      %39 = dma.vmem_to_hbm [thread:$0]  %s37, 32, %s1, [#allocation4]
    $region13: #{tpu_custom_call.1} parent=1 // pred_fallthru
      _
    // Predicated region
    $region14: #{tpu_custom_call.1} parent=1 // pred_check
      _
    $region15: #{tpu_custom_call.1} parent=1 // pred_check_branch
      %41 = sbr.rel (0) target = $region17
    $region16: #{tpu_custom_call.1} parent=1 // pred_region
      %42 = dma.done [#allocation4], 32
    $region17: #{tpu_custom_call.1} parent=1 // pred_fallthru
      _
    %43 = vsyncpa [#allocation3], 1
    %44 = vsyncpa [#allocation4], 1

</llo_original>
